<compile_context>
chip_gen: v5e
topology: v5e:2x2
jax: 0.10.0
libtpu: 0.0.40
codegen_flags: <defaults>
</compile_context>

<pallas_src>
import jax
import jax.numpy as jnp
from jax.experimental import pallas as pl
from jax.experimental.pallas import tpu as pltpu


def _yolo_loss_kernel(wm_ref,     # SMEM (2, n_tiles): row0 = weight, row1 = mode
                      pred_ref,   # VMEM (ROWS, COLS) tile of concatenated predictions
                      truth_ref,  # VMEM (ROWS, COLS) tile of concatenated targets
                      out_ref,    # SMEM (1, 1) total loss
                      acc_ref):   # VMEM (ROWS, COLS) f32 running accumulator
    i = pl.program_id(0)

    @pl.when(i == 0)
    def _init():
        acc_ref[...] = jnp.zeros_like(acc_ref)

    w = wm_ref[0, i]          # (scale / batch_size) for this tile's loss term
    m = wm_ref[1, i]          # 0.0 -> MSE, 1.0 -> SmoothL1(beta=1)

    d = pred_ref[...].astype(jnp.float32) - truth_ref[...].astype(jnp.float32)
    ad = jnp.abs(d)
    sq = d * d
    # MSE: d^2.   SmoothL1: 0.5*d^2 if |d| < 1 else |d| - 0.5.
    val = jnp.where((m > 0.5) & (ad >= 1.0), ad - 0.5, (1.0 - 0.5 * m) * sq)
    acc_ref[...] += w * val   # elementwise accumulate (VPU only; no per-step reduce)

    @pl.when(i == pl.num_programs(0) - 1)
    def _finalize():
        out_ref[0, 0] = jnp.sum(acc_ref[...])   # single cross-lane reduction


def yolo_loss(coord, truth_coord, confidences, truth_conf, class_vec, truth_cls,
              batch_size, coord_scale=1.0, class_scale=1.0, conf_scale=1.0,
              block_cols=512, max_block_rows=256):
    """Pallas TPU implementation of Yolo_loss.forward (returns scalar f32)."""
    pred_streams = [coord[0], coord[1], coord[2], coord[3], confidences, class_vec]
    truth_streams = [truth_coord[0], truth_coord[1], truth_coord[2], truth_coord[3],
                     truth_conf, truth_cls]
    pred_streams = [jnp.asarray(s) for s in pred_streams]
    truth_streams = [jnp.asarray(s) for s in truth_streams]

    # Keep bf16 inputs as bf16 (halves HBM traffic); otherwise move data as f32.
    all_bf16 = all(s.dtype == jnp.bfloat16 for s in pred_streams + truth_streams)
    io_dtype = jnp.bfloat16 if all_bf16 else jnp.float32

    sizes = [int(s.size) for s in pred_streams]
    assert sizes == [int(s.size) for s in truth_streams], "pred/truth shapes must match"

    # Tile shape: lane-dense COLS (multiple of 128), sublane-dense ROWS
    # (multiple of 16), sized so the largest stream needs little padding,
    # capped so double-buffered tiles stay tiny vs. the scoped-VMEM default.
    cols = int(block_cols)
    needed_rows = -(-max(sizes) // cols)
    rows = int(min(max_block_rows, max(16, -(-needed_rows // 16) * 16)))
    tile = rows * cols

    def _pad_to_tiles(x):
        x = x.astype(io_dtype).reshape(-1)
        n = -(-x.size // tile)                    # whole tiles for this stream
        pad = n * tile - x.size
        if pad:
            x = jnp.pad(x, (0, pad))              # zeros contribute 0 loss
        return x, n

    padded_pred, tiles_per_stream = zip(*[_pad_to_tiles(s) for s in pred_streams])
    padded_truth, _ = zip(*[_pad_to_tiles(s) for s in truth_streams])
    n_tiles = int(sum(tiles_per_stream))

    pred2d = jnp.concatenate(padded_pred).reshape(n_tiles * rows, cols)
    truth2d = jnp.concatenate(padded_truth).reshape(n_tiles * rows, cols)

    # Per-tile weight (batch_size folded in) and mode flag (0=MSE, 1=SmoothL1).
    inv_b = 1.0 / jnp.asarray(batch_size, jnp.float32)
    w_coord = jnp.asarray(coord_scale, jnp.float32) * inv_b
    w_conf = jnp.asarray(conf_scale, jnp.float32) * inv_b
    w_class = jnp.asarray(class_scale, jnp.float32) * inv_b
    stream_w = [w_coord, w_coord, w_coord, w_coord, w_conf, w_class]
    stream_m = [0.0, 0.0, 1.0, 1.0, 0.0, 0.0]
    tile_w = jnp.concatenate([jnp.full((n,), w, jnp.float32)
                              for n, w in zip(tiles_per_stream, stream_w)])
    tile_m = jnp.concatenate([jnp.full((n,), m, jnp.float32)
                              for n, m in zip(tiles_per_stream, stream_m)])
    wm = jnp.stack([tile_w, tile_m])              # (2, n_tiles), lives in SMEM

    bytes_accessed = int(pred2d.size) * pred2d.dtype.itemsize * 2 + int(wm.size) * 4 + 4
    cost = pl.CostEstimate(flops=6 * int(pred2d.size), transcendentals=0,
                           bytes_accessed=int(bytes_accessed))

    grid_spec = pltpu.PrefetchScalarGridSpec(
        num_scalar_prefetch=1,                    # wm -> SMEM before the grid runs
        grid=(n_tiles,),
        in_specs=[pl.BlockSpec((rows, cols), lambda i, wm_ref: (i, 0)),
                  pl.BlockSpec((rows, cols), lambda i, wm_ref: (i, 0))],
        out_specs=pl.BlockSpec(memory_space=pltpu.MemorySpace.SMEM),
        scratch_shapes=[pltpu.VMEM((rows, cols), jnp.float32)],
    )

    out = pl.pallas_call(
        _yolo_loss_kernel,
        out_shape=jax.ShapeDtypeStruct((1, 1), jnp.float32),
        grid_spec=grid_spec,
        compiler_params=pltpu.CompilerParams(
            dimension_semantics=("arbitrary",)),  # grid axis is a reduction
        cost_estimate=cost,
    )(wm, pred2d, truth2d)
    return out[0, 0]


def _reference(coord, truth_coord, conf, tconf, cls, tcls, batch_size,
               coord_scale=1.0, class_scale=1.0, conf_scale=1.0):
    """Pure-JAX reference mirroring the PyTorch module."""
    def mse(a, b):
        d = a.astype(jnp.float32) - b.astype(jnp.float32)
        return jnp.sum(d * d)

    def smooth_l1(a, b):
        d = a.astype(jnp.float32) - b.astype(jnp.float32)
        ad = jnp.abs(d)
        return jnp.sum(jnp.where(ad < 1.0, 0.5 * d * d, ad - 0.5))

    loss_x = mse(coord[0], truth_coord[0]) / batch_size
    loss_y = mse(coord[1], truth_coord[1]) / batch_size
    loss_w = smooth_l1(coord[2], truth_coord[2]) / batch_size
    loss_h = smooth_l1(coord[3], truth_coord[3]) / batch_size
    loss_coord = coord_scale * (loss_x + loss_y + loss_w + loss_h)
    loss_conf = conf_scale * mse(conf, tconf) / batch_size
    loss_class = class_scale * mse(cls, tcls) / batch_size
    return loss_coord + loss_conf + loss_class


if __name__ == "__main__":
    key = jax.random.PRNGKey(0)
    B = 2          # batch size
    S = 256        # flattened grid cells * anchors (e.g. 16x16 grid, 1 anchor)
    C = 4          # number of classes

    keys = jax.random.split(key, 6)
    coord = jax.random.normal(keys[0], (4, B, S), dtype=jnp.float32)
    truth_coord = jax.random.normal(keys[1], (4, B, S), dtype=jnp.float32)
    confidences = jax.random.uniform(keys[2], (B, S), dtype=jnp.float32)
    truth_conf = (jax.random.uniform(keys[3], (B, S)) > 0.9).astype(jnp.float32)
    class_vec = jax.random.normal(keys[4], (B, S, C), dtype=jnp.float32)
    truth_cls = (jax.random.uniform(keys[5], (B, S, C)) > 0.75).astype(jnp.float32)

    total = yolo_loss(coord, truth_coord, confidences, truth_conf,
                      class_vec, truth_cls, batch_size=B)
    total = jax.block_until_ready(total)

    ref = _reference(coord, truth_coord, confidences, truth_conf,
                     class_vec, truth_cls, batch_size=B)
    assert jnp.allclose(total, ref, rtol=1e-4, atol=1e-4), (total, ref)

    print("KERNEL_OK")
</pallas_src>

<mosaic_0001>
module attributes {stable_mosaic.version = 11 : i64} {
  func.func @_yolo_loss_kernel(%arg0: i32, %arg1: memref<2x6xf32, #tpu.memory_space<smem>>, %arg2: memref<16x512xf32, #tpu.memory_space<vmem>>, %arg3: memref<16x512xf32, #tpu.memory_space<vmem>>, %arg4: memref<1x1xf32, #tpu.memory_space<smem>>, %arg5: memref<16x512xf32, #tpu.memory_space<vmem>>) attributes {dimension_semantics = [#tpu.dimension_semantics<arbitrary>], iteration_bounds = array<i64: 6>, scalar_prefetch = 1 : i64, scratch_operands = 1 : i64, tpu.core_type = #tpu.core_type<tc>, window_params = [{transform_indices = @transform_0, window_bounds = array<i64: 16, 512>}, {transform_indices = @transform_1, window_bounds = array<i64: 16, 512>}, {transform_indices = @transform_2, window_bounds = array<i64: 1, 1>}]} {
    %c0_i32 = arith.constant 0 : i32
    %0 = arith.cmpi eq, %arg0, %c0_i32 : i32
    %1 = arith.extui %0 : i1 to i32
    %c0_i32_0 = arith.constant 0 : i32
    %2 = arith.cmpi ne, %1, %c0_i32_0 : i32
    scf.if %2 {
      %cst_14 = arith.constant 0.000000e+00 : f32
      %32 = vector.broadcast %cst_14 : f32 to vector<16x512xf32>
      %c0_15 = arith.constant 0 : index
      %c0_16 = arith.constant 0 : index
      %33 = vector.load %arg5[%c0_15, %c0_16] : memref<16x512xf32, #tpu.memory_space<vmem>>, vector<16x512xf32>
      tpu.vector_store %arg5[%c0_15, %c0_16], %32 {strides = array<i32>} : memref<16x512xf32, #tpu.memory_space<vmem>>, vector<16x512xf32>,
    } else {
    }
    %c0 = arith.constant 0 : index
    %3 = arith.index_cast %arg0 : i32 to index
    %4 = memref.load %arg1[%c0, %3] : memref<2x6xf32, #tpu.memory_space<smem>>
    %c1 = arith.constant 1 : index
    %5 = arith.index_cast %arg0 : i32 to index
    %6 = memref.load %arg1[%c1, %5] : memref<2x6xf32, #tpu.memory_space<smem>>
    %c0_1 = arith.constant 0 : index
    %c0_2 = arith.constant 0 : index
    %7 = vector.load %arg2[%c0_1, %c0_2] : memref<16x512xf32, #tpu.memory_space<vmem>>, vector<16x512xf32>
    %c0_3 = arith.constant 0 : index
    %c0_4 = arith.constant 0 : index
    %8 = vector.load %arg3[%c0_3, %c0_4] : memref<16x512xf32, #tpu.memory_space<vmem>>, vector<16x512xf32>
    %9 = arith.subf %7, %8 : vector<16x512xf32>
    %10 = math.absf %9 : vector<16x512xf32>
    %11 = arith.mulf %9, %9 : vector<16x512xf32>
    %cst = arith.constant 5.000000e-01 : f32
    %12 = arith.cmpf ogt, %6, %cst : f32
    %cst_5 = arith.constant 1.000000e+00 : f32
    %13 = vector.broadcast %cst_5 : f32 to vector<16x512xf32>
    %14 = arith.cmpf oge, %10, %13 : vector<16x512xf32>
    %15 = vector.broadcast %12 : i1 to vector<16x512xi1>
    %16 = arith.andi %15, %14 : vector<16x512xi1>
    %cst_6 = arith.constant 5.000000e-01 : f32
    %17 = vector.broadcast %cst_6 : f32 to vector<16x512xf32>
    %18 = arith.subf %10, %17 : vector<16x512xf32>
    %cst_7 = arith.constant 5.000000e-01 : f32
    %19 = arith.mulf %cst_7, %6 : f32
    %cst_8 = arith.constant 1.000000e+00 : f32
    %20 = arith.subf %cst_8, %19 : f32
    %21 = vector.broadcast %20 : f32 to vector<16x512xf32>
    %22 = arith.mulf %21, %11 : vector<16x512xf32>
    %23 = arith.select %16, %18, %22 : vector<16x512xi1>, vector<16x512xf32>
    %c0_9 = arith.constant 0 : index
    %c0_10 = arith.constant 0 : index
    %24 = vector.load %arg5[%c0_9, %c0_10] : memref<16x512xf32, #tpu.memory_space<vmem>>, vector<16x512xf32>
    %25 = vector.broadcast %4 : f32 to vector<16x512xf32>
    %26 = arith.mulf %25, %23 : vector<16x512xf32>
    %27 = arith.addf %24, %26 : vector<16x512xf32>
    %c0_11 = arith.constant 0 : index
    %c0_12 = arith.constant 0 : index
    %28 = vector.load %arg5[%c0_11, %c0_12] : memref<16x512xf32, #tpu.memory_space<vmem>>, vector<16x512xf32>
    tpu.vector_store %arg5[%c0_11, %c0_12], %27 {strides = array<i32>} : memref<16x512xf32, #tpu.memory_space<vmem>>, vector<16x512xf32>,
    %c5_i32 = arith.constant 5 : i32
    %29 = arith.cmpi eq, %arg0, %c5_i32 : i32
    %30 = arith.extui %29 : i1 to i32
    %c0_i32_13 = arith.constant 0 : i32
    %31 = arith.cmpi ne, %30, %c0_i32_13 : i32
    scf.if %31 {
      %c0_14 = arith.constant 0 : index
      %c0_15 = arith.constant 0 : index
      %32 = vector.load %arg5[%c0_14, %c0_15] : memref<16x512xf32, #tpu.memory_space<vmem>>, vector<16x512xf32>
      %33 = vector.shape_cast %32 : vector<16x512xf32> to vector<1x16x512xf32>
      %cst_16 = arith.constant dense<0.000000e+00> : vector<1xf32>
      %34 = vector.multi_reduction <add>, %33, %cst_16 [1, 2] : vector<1x16x512xf32> to vector<1xf32>
      %35 = vector.shape_cast %34 : vector<1xf32> to vector<1x1x1xf32>
      %36 = vector.extract %35[0, 0, 0] : f32 from vector<1x1x1xf32>
      %c0_17 = arith.constant 0 : index
      %c0_18 = arith.constant 0 : index
      %37 = memref.load %arg4[%c0_17, %c0_18] : memref<1x1xf32, #tpu.memory_space<smem>>
      memref.store %36, %arg4[%c0_17, %c0_18] : memref<1x1xf32, #tpu.memory_space<smem>>
    } else {
    }
    return
  }
  func.func @transform_0(%arg0: i32, %arg1: memref<2x6xf32, #tpu.memory_space<smem>>) -> (i32, i32) {
    %c0_i32 = arith.constant 0 : i32
    %c0_i32_0 = arith.constant 0 : i32
    return %arg0, %c0_i32 : i32, i32
  }
  func.func @transform_1(%arg0: i32, %arg1: memref<2x6xf32, #tpu.memory_space<smem>>) -> (i32, i32) {
    %c0_i32 = arith.constant 0 : i32
    %c0_i32_0 = arith.constant 0 : i32
    return %arg0, %c0_i32 : i32, i32
  }
  func.func @transform_2(%arg0: i32, %arg1: memref<2x6xf32, #tpu.memory_space<smem>>) -> (i32, i32) {
    %c0_i32 = arith.constant 0 : i32
    %c0_i32_0 = arith.constant 0 : i32
    %c0_i32_1 = arith.constant 0 : i32
    return %c0_i32, %c0_i32_0 : i32, i32
  }
}

</mosaic_0001>

<llo_original>
// kernel: tpu_custom_call.1
$region0: #{tpu_custom_call.1}
  #allocation0 [shape = 'u32[]', space=smem, size = 0x4, offset = 0x4, fixed_abs, tag = 'smem constant byte address 0x4 - core index']
  #allocation1 [shape = 'u32[72,128]{1,0:T(1,128)}', space=vmem, size = 0x9000, scoped, tag = 'internal scratch']
  #allocation2 [shape = 'f32[16,512]{1,0:T(8,128)}', space=vmem, size = 0x8000, scoped, tag = 'scratch operand']
  #allocation3 [shape = 's32[1]{0}', space=sflag, size = 0x4, scoped, tag = 'scoped memory for tpu_custom_call.1']
  #allocation4 [shape = 'u8[1024]{0}', space=smem, size = 0x400, scoped, tag = 'prefetched SMEM operand 0']
  %s0 = inlined_call_operand.hbm [shape: f32[2,6], index: 0, kind: input, shape index: {}]
  %s1 = inlined_call_operand.hbm [shape: f32[96,512], index: 1, kind: input, shape index: {}]
  %s2 = inlined_call_operand.hbm [shape: f32[96,512], index: 2, kind: input, shape index: {}]
  %s3 = inlined_call_operand.hbm [shape: f32[1,1], index: 3, kind: output, shape index: {}]
  %s4 = sld [smem:[#allocation0]]
  $region57: #{tpu_custom_call.1} parent=0
    _
  %s6 = ssub.s32 1, %s4
  %s7 = scalar_select 0, %s6, %s4
  %s9 = sshll.u32 %s0, 4
  %s10 = int_to_ptr.hbm [resolvable:$true] %s9
  %12 = dma.hbm_to_smem %s10, 32, [#allocation4], [#allocation3]
  %14 = dma.done [#allocation3], 32
  %15 = sfence
  $region1: #{tpu_custom_call.1} parent=0
    #allocation5 [shape = 'u8[65536]{0}', space=vmem, size = 0x10000, scoped, tag = 'input window, operand 1']
    #allocation6 [shape = 's32[2]{0}', space=sflag, size = 0x8, scoped, tag = 'scoped memory for tpu_custom_call.1']
    #allocation7 [shape = 's32[2]{0}', space=sflag, size = 0x8, scoped, tag = 'scoped memory for tpu_custom_call.1']
    #allocation8 [shape = 'u8[65536]{0}', space=vmem, size = 0x10000, scoped, tag = 'input window, operand 2']
    #allocation9 [shape = 's32[2]{0}', space=sflag, size = 0x8, scoped, tag = 'scoped memory for tpu_custom_call.1']
    #allocation10 [shape = 'u8[512]{0}', space=smem, size = 0x200, scoped, tag = 'output window, operand 0, single buffered']
    %16 = vsyncpa [#allocation6], 0
    %s17 = scalar_lea.sflag [#allocation6], 1
    %18 = vsyncpa %s17, 0
    %19 = vsyncpa [#allocation9], 0
    %s20 = scalar_lea.sflag [#allocation9], 1
    %21 = vsyncpa %s20, 0
    %22 = vsyncpa [#allocation7], 0
    loop: start=0, step=1, limit=8
    $region2: #{tpu_custom_call.1} parent=1 // loop_pre_header
      _
    $region3: #{tpu_custom_call.1} parent=1 // loop_header
      %s24 = sphi 0, %s28
      %p25 = scmp.ge.s32.totalorder %s24, 8
      %s34 = sphi 0, %s36
      %s37 = sphi 0, %s34
      %s38 = sphi 0, %s37
      %s54 = sphi 0, %s38
      %s60 = sphi 0, %s62
      %s63 = sphi 0, %s60
      %s64 = sphi 0, %s63
      %s80 = sphi 0, %s64
      %s84 = sphi 0, %s84
      %s86 = sphi 0, %s84
      %s87 = sphi 0, %s86
      %s101 = sphi 0, %s87
    $region4: #{tpu_custom_call.1} parent=1 // loop_header_branch
      %27 = sbr.rel (%p25) target = $region8
    $region5: #{tpu_custom_call.1} parent=1 // loop_body
      %s29 = ssub.s32 %s24, 1
      %s30 = ssub.s32 %s24, 2
      %s31 = sadd.s32 %s24, 1
      %s32 = ssub.s32 %s24, %s31
      %p33 = scmp.eq.s32.totalorder %s32, 0
      %s35 = sadd.s32 %s34, 1
      %s36 = scalar_select %p33, %s34, %s35
      %p39 = pneg %p33
      %p40 = scmp.eq.s32.totalorder %s24, 5
      %p41 = por %p39, %p40
      %p42 = scmp.ne.s32.totalorder %s34, %s37
      %p43 = scmp.eq.s32.totalorder %s24, 0
      %p44 = por %p42, %p43
      %p45 = scmp.ne.s32.totalorder %s34, %s37
      %p46 = scmp.eq.s32.totalorder %s29, 5
      %p47 = por %p45, %p46
      %p48 = scmp.ne.s32.totalorder %s37, %s38
      %p49 = scmp.eq.s32.totalorder %s29, 0
      %p50 = por %p48, %p49
      %p51 = scmp.ne.s32.totalorder %s37, %s38
      %p52 = scmp.eq.s32.totalorder %s30, 5
      %p53 = por %p51, %p52
      %p55 = scmp.ne.s32.totalorder %s38, %s54
      %p56 = scmp.eq.s32.totalorder %s30, 0
      %p57 = por %p55, %p56
      %s58 = ssub.s32 %s24, %s31
      %p59 = scmp.eq.s32.totalorder %s58, 0
      %s61 = sadd.s32 %s60, 1
      %s62 = scalar_select %p59, %s60, %s61
      %p65 = pneg %p59
      %p66 = scmp.eq.s32.totalorder %s24, 5
      %p67 = por %p65, %p66
      %p68 = scmp.ne.s32.totalorder %s60, %s63
      %p69 = scmp.eq.s32.totalorder %s24, 0
      %p70 = por %p68, %p69
      %p71 = scmp.ne.s32.totalorder %s60, %s63
      %p72 = scmp.eq.s32.totalorder %s29, 5
      %p73 = por %p71, %p72
      %p74 = scmp.ne.s32.totalorder %s63, %s64
      %p75 = scmp.eq.s32.totalorder %s29, 0
      %p76 = por %p74, %p75
      %p77 = scmp.ne.s32.totalorder %s63, %s64
      %p78 = scmp.eq.s32.totalorder %s30, 5
      %p79 = por %p77, %p78
      %p81 = scmp.ne.s32.totalorder %s64, %s80
      %p82 = scmp.eq.s32.totalorder %s30, 0
      %p83 = por %p81, %p82
      %s85 = sadd.s32 %s84, 1
      %p88 = scmp.eq.s32.totalorder %s24, 5
      %p89 = scmp.ne.s32.totalorder %s84, %s86
      %p90 = scmp.eq.s32.totalorder %s24, 0
      %p91 = por %p89, %p90
      %p92 = scmp.ne.s32.totalorder %s84, %s86
      %p93 = scmp.eq.s32.totalorder %s29, 5
      %p94 = por %p92, %p93
      %p95 = scmp.ne.s32.totalorder %s86, %s87
      %p96 = scmp.eq.s32.totalorder %s29, 0
      %p97 = por %p95, %p96
      %p98 = scmp.ne.s32.totalorder %s86, %s87
      %p99 = scmp.eq.s32.totalorder %s30, 5
      %p100 = por %p98, %p99
      %p102 = scmp.ne.s32.totalorder %s87, %s101
      %p103 = scmp.eq.s32.totalorder %s30, 0
      %p104 = por %p102, %p103
      %p105 = scmp.le.s32.totalorder 1, %s24
      %p106 = scmp.lt.s32.totalorder %s24, 7
      %p107 = pnand %p105, %p106
      %p108 = pneg %p107
      // Predicated region
      $region9: #{tpu_custom_call.1} parent=5 // pred_check
        _
      $region10: #{tpu_custom_call.1} parent=5 // pred_check_branch
        %110 = sbr.rel (%p107) target = $region12
      $region11: #{tpu_custom_call.1} parent=5 // pred_region
        %s111 = ssub.s32 %s24, 1
      $region12: #{tpu_custom_call.1} parent=5 // pred_fallthru
        _
      %p112 = scmp.lt.s32.totalorder %s24, 6
      // Predicated region
      $region13: #{tpu_custom_call.1} parent=5 // pred_check
        %p113 = pneg %p112
      $region14: #{tpu_custom_call.1} parent=5 // pred_check_branch
        %115 = sbr.rel (%p113) target = $region16
      $region15: #{tpu_custom_call.1} parent=5 // pred_region
        // Predicated region
        $region17: #{tpu_custom_call.1} parent=15 // pred_check
          %p116 = pneg %p44
        $region18: #{tpu_custom_call.1} parent=15 // pred_check_branch
          %118 = sbr.rel (%p116) target = $region20
        $region19: #{tpu_custom_call.1} parent=15 // pred_region
          %s119 = sand.u32 %s34, 1
          %s120 = scalar_lea.sflag [#allocation6], %s119
          %s121 = sand.u32 %s34, 1
          %s122 = smul.addr %s121, 64
          %s123 = scalar_lea.vmem [#allocation5], %s122
          %s124 = smul.u32 2, %s24
          %126 = vsyncadd %s120, 0
          %s127 = smul.addr %s124, 4
          %s128 = smul.addr %s127, 8
          %s129 = scalar_lea.hbm %s1, %s128
          %s130 = sshll.u32 %s129, 4
          %s131 = int_to_ptr.hbm [resolvable:$true] %s130
          %s132 = sshll.u32 %s123, 4
          %s133 = int_to_ptr.vmem [resolvable:$true] %s132
          %138 = dma.hbm_to_vmem [thread:$0]  %s131, 1024, %s133, %s120, 512, 512, 32
        $region20: #{tpu_custom_call.1} parent=15 // pred_fallthru
          _
        // Predicated region
        $region21: #{tpu_custom_call.1} parent=15 // pred_check
          %p139 = pneg %p70
        $region22: #{tpu_custom_call.1} parent=15 // pred_check_branch
          %141 = sbr.rel (%p139) target = $region24
        $region23: #{tpu_custom_call.1} parent=15 // pred_region
          %s142 = sand.u32 %s60, 1
          %s143 = scalar_lea.sflag [#allocation9], %s142
          %s144 = sand.u32 %s60, 1
          %s145 = smul.addr %s144, 64
          %s146 = scalar_lea.vmem [#allocation8], %s145
          %s147 = smul.u32 2, %s24
          %149 = vsyncadd %s143, 0
          %s150 = smul.addr %s147, 4
          %s151 = smul.addr %s150, 8
          %s152 = scalar_lea.hbm %s2, %s151
          %s153 = sshll.u32 %s152, 4
          %s154 = int_to_ptr.hbm [resolvable:$true] %s153
          %s155 = sshll.u32 %s146, 4
          %s156 = int_to_ptr.vmem [resolvable:$true] %s155
          %161 = dma.hbm_to_vmem [thread:$0]  %s154, 1024, %s156, %s143, 512, 512, 32
        $region24: #{tpu_custom_call.1} parent=15 // pred_fallthru
          _
      $region16: #{tpu_custom_call.1} parent=5 // pred_fallthru
        _
      %p162 = scmp.le.s32.totalorder 1, %s24
      %p163 = scmp.lt.s32.totalorder %s24, 7
      %p164 = pnand %p162, %p163
      %p165 = pneg %p164
      // Predicated region
      $region25: #{tpu_custom_call.1} parent=5 // pred_check
        _
      $region26: #{tpu_custom_call.1} parent=5 // pred_check_branch
        %167 = sbr.rel (%p164) target = $region28
      $region27: #{tpu_custom_call.1} parent=5 // pred_region
        %s168 = ssub.s32 %s24, 1
        %s169 = sand.u32 %s37, 1
        %s170 = scalar_lea.sflag [#allocation6], %s169
        %s171 = sand.u32 %s37, 1
        %s172 = smul.addr %s171, 64
        %s173 = scalar_lea.vmem [#allocation5], %s172
        // Predicated region
        $region29: #{tpu_custom_call.1} parent=27 // pred_check
          %p174 = pneg %p50
        $region30: #{tpu_custom_call.1} parent=27 // pred_check_branch
          %176 = sbr.rel (%p174) target = $region32
        $region31: #{tpu_custom_call.1} parent=27 // pred_region
          %178 = dma.done %s170, 1024
        $region32: #{tpu_custom_call.1} parent=27 // pred_fallthru
          _
        %s179 = sand.u32 %s63, 1
        %s180 = scalar_lea.sflag [#allocation9], %s179
        %s181 = sand.u32 %s63, 1
        %s182 = smul.addr %s181, 64
        %s183 = scalar_lea.vmem [#allocation8], %s182
        // Predicated region
        $region33: #{tpu_custom_call.1} parent=27 // pred_check
          %p184 = pneg %p76
        $region34: #{tpu_custom_call.1} parent=27 // pred_check_branch
          %186 = sbr.rel (%p184) target = $region36
        $region35: #{tpu_custom_call.1} parent=27 // pred_region
          %188 = dma.done %s180, 1024
        $region36: #{tpu_custom_call.1} parent=27 // pred_fallthru
          _
        %s189 = sand.u32 %s37, 1
        %s190 = scalar_lea.sflag [#allocation6], %s189
        %s191 = sand.u32 %s37, 1
        %s192 = smul.addr %s191, 64
        %s193 = scalar_lea.vmem [#allocation5], %s192
        %p194 = pneg %p50
        %p195 = pneg %p47
        %s196 = sand.u32 %s63, 1
        %s197 = scalar_lea.sflag [#allocation9], %s196
        %s198 = sand.u32 %s63, 1
        %s199 = smul.addr %s198, 64
        %s200 = scalar_lea.vmem [#allocation8], %s199
        %p201 = pneg %p76
        %p202 = pneg %p73
        %p203 = pneg %p97
        %p204 = pneg %p94
        %s205 = smul.u32 2, %s29
        %s206 = smul.u32 2, %s29
        %p207 = scmp.eq.s32.totalorder %s29, 0
        // Predicated region
        $region37: #{tpu_custom_call.1} parent=27 // pred_check
          %p208 = pneg %p207
        $region38: #{tpu_custom_call.1} parent=27 // pred_check_branch
          %210 = sbr.rel (%p208) target = $region40
        $region39: #{tpu_custom_call.1} parent=27 // pred_region
          %211 = vst [vmem:[#allocation2] sm:$0xff] 0.0
          %212 = vst [vmem:[#allocation2 + $0x8] sm:$0xff] 0.0
          %213 = vst [vmem:[#allocation2 + $0x10] sm:$0xff] 0.0
          %214 = vst [vmem:[#allocation2 + $0x18] sm:$0xff] 0.0
          %215 = vst [vmem:[#allocation2 + $0x20] sm:$0xff] 0.0
          %216 = vst [vmem:[#allocation2 + $0x28] sm:$0xff] 0.0
          %217 = vst [vmem:[#allocation2 + $0x30] sm:$0xff] 0.0
          %218 = vst [vmem:[#allocation2 + $0x38] sm:$0xff] 0.0
        $region40: #{tpu_custom_call.1} parent=27 // pred_fallthru
          _
        %s219 = sld [smem:[#allocation4 + %s29]]
        %s220 = sshra.s32 %s29, 7
        %s221 = sand.u32 %s29, 127
        %s222 = sadd.s32 %s220, 1
        %s223 = smul.u32 %s222, 128
        %s224 = sshra.s32 %s29, 7
        %s225 = sand.u32 %s29, 127
        %s226 = sadd.s32 %s223, %s225
        %s227 = sld [smem:[#allocation4 + %s226]]
        %v228 = vld [vmem:[%s173] sm:$0xff]
        %v229 = vld [vmem:[%s173 + $0x8] sm:$0xff]
        %v230 = vld [vmem:[%s173 + $0x10] sm:$0xff]
        %v231 = vld [vmem:[%s173 + $0x18] sm:$0xff]
        %v232 = vld [vmem:[%s173 + $0x20] sm:$0xff]
        %v233 = vld [vmem:[%s173 + $0x28] sm:$0xff]
        %v234 = vld [vmem:[%s173 + $0x30] sm:$0xff]
        %v235 = vld [vmem:[%s173 + $0x38] sm:$0xff]
        %v236 = vld [vmem:[%s183] sm:$0xff]
        %v237 = vld [vmem:[%s183 + $0x8] sm:$0xff]
        %v238 = vld [vmem:[%s183 + $0x10] sm:$0xff]
        %v239 = vld [vmem:[%s183 + $0x18] sm:$0xff]
        %v240 = vld [vmem:[%s183 + $0x20] sm:$0xff]
        %v241 = vld [vmem:[%s183 + $0x28] sm:$0xff]
        %v242 = vld [vmem:[%s183 + $0x30] sm:$0xff]
        %v243 = vld [vmem:[%s183 + $0x38] sm:$0xff]
        %v244 = vsub.f32 %v228, %v236
        %v245 = vsub.f32 %v229, %v237
        %v246 = vsub.f32 %v230, %v238
        %v247 = vsub.f32 %v231, %v239
        %v248 = vsub.f32 %v232, %v240
        %v249 = vsub.f32 %v233, %v241
        %v250 = vsub.f32 %v234, %v242
        %v251 = vsub.f32 %v235, %v243
        %v252 = vand.u32 2147483647, %v244
        %v253 = vand.u32 2147483647, %v245
        %v254 = vand.u32 2147483647, %v246
        %v255 = vand.u32 2147483647, %v247
        %v256 = vand.u32 2147483647, %v248
        %v257 = vand.u32 2147483647, %v249
        %v258 = vand.u32 2147483647, %v250
        %v259 = vand.u32 2147483647, %v251
        %v260 = vmul.f32 %v244, %v244
        %v261 = vmul.f32 %v245, %v245
        %v262 = vmul.f32 %v246, %v246
        %v263 = vmul.f32 %v247, %v247
        %v264 = vmul.f32 %v248, %v248
        %v265 = vmul.f32 %v249, %v249
        %v266 = vmul.f32 %v250, %v250
        %v267 = vmul.f32 %v251, %v251
        %p268 = scmp.gt.f32.partialorder %s227, 0.5
        %vm269 = vcmp.ge.f32.partialorder %v252, 1.0
        %vm270 = vcmp.ge.f32.partialorder %v253, 1.0
        %vm271 = vcmp.ge.f32.partialorder %v254, 1.0
        %vm272 = vcmp.ge.f32.partialorder %v255, 1.0
        %vm273 = vcmp.ge.f32.partialorder %v256, 1.0
        %vm274 = vcmp.ge.f32.partialorder %v257, 1.0
        %vm275 = vcmp.ge.f32.partialorder %v258, 1.0
        %vm276 = vcmp.ge.f32.partialorder %v259, 1.0
        %s277 = scalar_select %p268, 1, 0
        %v278 = vstv %s277
        %vm279 = vcmp.eq.s32.totalorder %v278, 1
        %vm280 = vmand %vm279, %vm269
        %vm281 = vmand %vm279, %vm270
        %vm282 = vmand %vm279, %vm271
        %vm283 = vmand %vm279, %vm272
        %vm284 = vmand %vm279, %vm273
        %vm285 = vmand %vm279, %vm274
        %vm286 = vmand %vm279, %vm275
        %vm287 = vmand %vm279, %vm276
        %v288 = vsub.f32 %v252, 0.5
        %v289 = vsub.f32 %v253, 0.5
        %v290 = vsub.f32 %v254, 0.5
        %v291 = vsub.f32 %v255, 0.5
        %v292 = vsub.f32 %v256, 0.5
        %v293 = vsub.f32 %v257, 0.5
        %v294 = vsub.f32 %v258, 0.5
        %v295 = vsub.f32 %v259, 0.5
        %s296 = smul.f32 %s227, 0.5
        %s297 = ssub.f32 1.0, %s296
        %v298 = vstv %s297
        %v299 = vmul.f32 %v298, %v260
        %v300 = vmul.f32 %v298, %v261
        %v301 = vmul.f32 %v298, %v262
        %v302 = vmul.f32 %v298, %v263
        %v303 = vmul.f32 %v298, %v264
        %v304 = vmul.f32 %v298, %v265
        %v305 = vmul.f32 %v298, %v266
        %v306 = vmul.f32 %v298, %v267
        %v307 = vsel %vm280, %v288, %v299
        %v308 = vsel %vm281, %v289, %v300
        %v309 = vsel %vm282, %v290, %v301
        %v310 = vsel %vm283, %v291, %v302
        %v311 = vsel %vm284, %v292, %v303
        %v312 = vsel %vm285, %v293, %v304
        %v313 = vsel %vm286, %v294, %v305
        %v314 = vsel %vm287, %v295, %v306
        %v315 = vld [vmem:[#allocation2] sm:$0xff]
        %v316 = vld [vmem:[#allocation2 + $0x8] sm:$0xff]
        %v317 = vld [vmem:[#allocation2 + $0x10] sm:$0xff]
        %v318 = vld [vmem:[#allocation2 + $0x18] sm:$0xff]
        %v319 = vld [vmem:[#allocation2 + $0x20] sm:$0xff]
        %v320 = vld [vmem:[#allocation2 + $0x28] sm:$0xff]
        %v321 = vld [vmem:[#allocation2 + $0x30] sm:$0xff]
        %v322 = vld [vmem:[#allocation2 + $0x38] sm:$0xff]
        %v323 = vstv %s219
        %v324 = vmul.f32 %v323, %v307
        %v325 = vmul.f32 %v323, %v308
        %v326 = vmul.f32 %v323, %v309
        %v327 = vmul.f32 %v323, %v310
        %v328 = vmul.f32 %v323, %v311
        %v329 = vmul.f32 %v323, %v312
        %v330 = vmul.f32 %v323, %v313
        %v331 = vmul.f32 %v323, %v314
        %v332 = vadd.f32 %v315, %v324
        %v333 = vadd.f32 %v316, %v325
        %v334 = vadd.f32 %v317, %v326
        %v335 = vadd.f32 %v318, %v327
        %v336 = vadd.f32 %v319, %v328
        %v337 = vadd.f32 %v320, %v329
        %v338 = vadd.f32 %v321, %v330
        %v339 = vadd.f32 %v322, %v331
        %340 = vst [vmem:[#allocation2] sm:$0xff] %v332
        %341 = vst [vmem:[#allocation2 + $0x8] sm:$0xff] %v333
        %342 = vst [vmem:[#allocation2 + $0x10] sm:$0xff] %v334
        %343 = vst [vmem:[#allocation2 + $0x18] sm:$0xff] %v335
        %344 = vst [vmem:[#allocation2 + $0x20] sm:$0xff] %v336
        %345 = vst [vmem:[#allocation2 + $0x28] sm:$0xff] %v337
        %346 = vst [vmem:[#allocation2 + $0x30] sm:$0xff] %v338
        %347 = vst [vmem:[#allocation2 + $0x38] sm:$0xff] %v339
        %p348 = scmp.eq.s32.totalorder %s29, 5
        // Predicated region
        $region41: #{tpu_custom_call.1} parent=27 // pred_check
          %p349 = pneg %p348
        $region42: #{tpu_custom_call.1} parent=27 // pred_check_branch
          %351 = sbr.rel (%p349) target = $region44
        $region43: #{tpu_custom_call.1} parent=27 // pred_region
          %v352 = vld [vmem:[#allocation2] sm:$0xff]
          %v353 = vld [vmem:[#allocation2 + $0x8] sm:$0xff]
          %v354 = vld [vmem:[#allocation2 + $0x10] sm:$0xff]
          %v355 = vld [vmem:[#allocation2 + $0x18] sm:$0xff]
          %v356 = vld [vmem:[#allocation2 + $0x20] sm:$0xff]
          %v357 = vld [vmem:[#allocation2 + $0x28] sm:$0xff]
          %v358 = vld [vmem:[#allocation2 + $0x30] sm:$0xff]
          %v359 = vld [vmem:[#allocation2 + $0x38] sm:$0xff]
          %v360 = vadd.f32 %v352, %v353
          %v361 = vadd.f32 %v360, %v354
          %v362 = vadd.f32 %v361, %v355
          %v363 = vadd.f32 %v362, %v356
          %v364 = vadd.f32 %v363, %v357
          %v365 = vadd.f32 %v364, %v358
          %v366 = vadd.f32 %v365, %v359
          %367 = vadd.xlane.f32.xlu0 %v366
          %v368 = vpop.xlane.xlu0 %367
          %v369 = vrot.slane %v368, 4
          %v370 = vadd.f32 %v368, %v369
          %v371 = vrot.slane %v370, 2
          %v372 = vadd.f32 %v370, %v371
          %v373 = vrot.slane %v372, 1
          %v374 = vadd.f32 %v372, %v373
          %s375 = vtos %v374
          %s376 = scalar_lea.smem [#allocation10], 0
          %377 = sst [smem:[%s376]] %s375
        $region44: #{tpu_custom_call.1} parent=27 // pred_fallthru
          _
        // Predicated region
        $region45: #{tpu_custom_call.1} parent=27 // pred_check
          %p378 = pneg %p94
        $region46: #{tpu_custom_call.1} parent=27 // pred_check_branch
          %380 = sbr.rel (%p378) target = $region48
        $region47: #{tpu_custom_call.1} parent=27 // pred_region
          %382 = vsyncadd [#allocation7], 0
          %s384 = sshll.u32 %s3, 4
          %s385 = int_to_ptr.hbm [resolvable:$true] %s384
          %387 = dma.smem_to_hbm [#allocation10], 16, %s385, [#allocation7]
        $region48: #{tpu_custom_call.1} parent=27 // pred_fallthru
          _
        // Predicated region
        $region49: #{tpu_custom_call.1} parent=27 // pred_check
          %p388 = pneg %p94
        $region50: #{tpu_custom_call.1} parent=27 // pred_check_branch
          %390 = sbr.rel (%p388) target = $region52
        $region51: #{tpu_custom_call.1} parent=27 // pred_region
          %392 = dma.done [#allocation7], 16
        $region52: #{tpu_custom_call.1} parent=27 // pred_fallthru
          _
        %393 = sfence
      $region28: #{tpu_custom_call.1} parent=5 // pred_fallthru
        _
      %p394 = scmp.le.s32.totalorder 2, %s24
      // Predicated region
      $region53: #{tpu_custom_call.1} parent=5 // pred_check
        %p395 = pneg %p394
      $region54: #{tpu_custom_call.1} parent=5 // pred_check_branch
        %397 = sbr.rel (%p395) target = $region56
      $region55: #{tpu_custom_call.1} parent=5 // pred_region
        %s398 = ssub.s32 %s24, 2
      $region56: #{tpu_custom_call.1} parent=5 // pred_fallthru
        _
    $region6: #{tpu_custom_call.1} parent=1 // loop_footer
      %s28 = sadd.s32 1, %s24
    $region7: #{tpu_custom_call.1} parent=1 // loop_footer_branch
      %23 = sbr.rel target = $region3
    $region8: #{tpu_custom_call.1} parent=1 // loop_exit
      _
    %399 = vsyncpa [#allocation6], 1
    %s400 = scalar_lea.sflag [#allocation6], 1
    %401 = vsyncpa %s400, 1
    %402 = vsyncpa [#allocation9], 1
    %s403 = scalar_lea.sflag [#allocation9], 1
    %404 = vsyncpa %s403, 1
    %405 = vsyncpa [#allocation7], 1
    %s406 = scalar_lea.sflag [#allocation7], 1
    %407 = vsyncpa %s406, 1

</llo_original>
